<compile_context>
chip_gen: v7x
topology: tpu7x:2x2x1
jax: 0.10.0
libtpu: 0.0.40
codegen_flags: <defaults>
</compile_context>

<pallas_src>
import functools
import math

import jax
import jax.numpy as jnp
from jax import lax
from jax.experimental import pallas as pl
from jax.experimental.pallas import tpu as pltpu


def _round_up(v, m):
    return (v + m - 1) // m * m


def _moe_gate_kernel(x_ref, w_ref, b_ref,
                     idx_ref, wts_ref, load_ref,
                     *, num_experts_pad, top_k, row_chunk, norm_topk_prob,
                     n_valid):
    """One token tile: logits -> un-normalized softmax -> iterative top-k.

    The tile is processed in row chunks of `row_chunk` rows so the live vreg
    set (scores + expert iota for one chunk) stays bounded independently of
    the DMA tile size.
    """
    i = pl.program_id(0)
    tn = x_ref.shape[0]
    num_chunks = tn // row_chunk

    load_acc = jnp.zeros((1, num_experts_pad), jnp.float32)

    for c in range(num_chunks):
        r0 = c * row_chunk
        r1 = r0 + row_chunk

        x = x_ref[r0:r1, :]                                    # (rc, D) input dtype
        # Padded expert columns have zero weights and a -inf bias, so their
        # exp() is exactly 0 and they can never win a top-k slot for a valid
        # row (on an all-underflow tie the lowest *real* expert index wins).
        logits = jnp.dot(x, w_ref[...],
                         preferred_element_type=jnp.float32) + b_ref[...]
        m = jnp.max(logits, axis=-1, keepdims=True)
        e = jnp.exp(logits - m)                                 # un-normalized softmax
        denom = jnp.sum(e, axis=-1, keepdims=True)              # >= 1 for valid rows

        eiota = lax.broadcasted_iota(jnp.int32, e.shape, 1)     # expert id per lane
        kiota = lax.broadcasted_iota(jnp.int32, (row_chunk, top_k), 1)

        # Iterative top-k on the un-normalized scores (monotone in the final
        # softmax).  Only (rc, K)-narrow outputs are carried through the loop.
        s = e
        wts_out = jnp.zeros((row_chunk, top_k), jnp.float32)
        idx_out = jnp.zeros((row_chunk, top_k), jnp.int32)
        for k in range(top_k):
            mk = jnp.max(s, axis=-1, keepdims=True)                     # (rc, 1)
            idxk = jnp.min(jnp.where(s >= mk, eiota, num_experts_pad),
                           axis=-1, keepdims=True)                      # first arg-max
            wts_out = jnp.where(kiota == k, mk, wts_out)
            idx_out = jnp.where(kiota == k, idxk, idx_out)
            s = jnp.where(eiota == idxk, -jnp.inf, s)

        # Expert load (hoisted out of the loop): selected lanes are exactly
        # the ones masked to -inf.  jnp.where (not multiply) with the valid
        # row mask so garbage rows of a partial final tile contribute 0.
        sel = (s == -jnp.inf).astype(jnp.float32)
        rowid = lax.broadcasted_iota(jnp.int32, (row_chunk, 1), 0) + (i * tn + r0)
        valid = rowid < n_valid
        load_acc = load_acc + jnp.sum(jnp.where(valid, sel, 0.0),
                                      axis=0, keepdims=True)

        # Deferred softmax divide: one reciprocal per row, scale only the K
        # selected values (approx=True is possible if tolerance allows).
        inv = pl.reciprocal(denom, approx=False)
        wts_out = wts_out * inv
        if top_k > 1 and norm_topk_prob:
            wts_out = wts_out / (jnp.sum(wts_out, axis=-1, keepdims=True) + 1e-9)

        # Narrow, per-chunk stores into the (tn, K) output tiles.
        idx_ref[r0:r1, :] = idx_out
        wts_ref[r0:r1, :] = wts_out

    load_ref[...] = load_acc


def moe_gate_forward(x, gate_w, gate_b, *, num_experts, top_k,
                     capacity_factor, alpha, norm_topk_prob=False,
                     token_tile=512, row_chunk=256):
    """x: [B, S, D]; gate_w: [E, D]; gate_b: [E].

    Returns (topk_indices [B,S,K] int32, topk_weights [B,S,K] float32,
             aux_loss scalar float32) matching PyTorch MoEGate.forward.
    """
    B, S, D = x.shape
    N = B * S
    E = num_experts
    K = top_k

    assert token_tile % 8 == 0 and row_chunk % 8 == 0
    assert token_tile <= row_chunk or token_tile % row_chunk == 0

    tn = min(token_tile, _round_up(N, 8))       # DMA tile rows (multiple of 8)
    rc = tn if tn <= row_chunk else row_chunk   # in-kernel compute chunk
    num_tiles = pl.cdiv(N, tn)                  # partial final tile handled in-kernel
    E_pad = _round_up(E, 128)                   # lane-dense expert dim

    # Free reshape; x is NOT padded/copied in HBM.  Keep the caller's dtype
    # for the DMA + MXU matmul (feed bf16 activations to halve HBM traffic).
    x_tok = x.reshape(N, D)

    # Pad experts: zero weight columns + -inf bias -> softmax weight 0,
    # never selected.
    w_t = jnp.zeros((D, E_pad), dtype=x.dtype).at[:, :E].set(
        gate_w.T.astype(x.dtype))
    b = jnp.full((1, E_pad), -jnp.inf, jnp.float32).at[:, :E].set(
        gate_b.astype(jnp.float32))

    # VMEM budget: double-buffered x tile + resident W/b + narrow output
    # tiles (lane-padded to 128 inside VMEM) + per-tile load partials.
    # Cap at 48 MiB (headroom on v7x's 64 MiB/TC); floor at 32 MiB so large
    # tiles work under v5e's 16 MiB default scoped limit.
    itemsize = jnp.dtype(x.dtype).itemsize
    est = (2 * tn * max(D, 128) * itemsize      # x tile (double-buffered)
           + 2 * D * E_pad * itemsize           # gate weight
           + 2 * 128 * 4                        # bias
           + 2 * 2 * tn * 128 * 4               # idx + wts output tiles
           + 2 * 8 * E_pad * 4)                 # load partials
    vmem_limit = int(min(max(2 * est, 32 << 20), 48 << 20))

    kernel = functools.partial(
        _moe_gate_kernel,
        num_experts_pad=E_pad, top_k=K, row_chunk=rc,
        norm_topk_prob=norm_topk_prob, n_valid=N)

    idx_tok, wts_tok, load_part = pl.pallas_call(
        kernel,
        out_shape=(
            jax.ShapeDtypeStruct((N, K), jnp.int32),     # narrow outputs: no padded
            jax.ShapeDtypeStruct((N, K), jnp.float32),   # writes, no wrapper slice
            jax.ShapeDtypeStruct((num_tiles, 1, E_pad), jnp.float32),
        ),
        grid_spec=pltpu.PrefetchScalarGridSpec(
            num_scalar_prefetch=0,
            grid=(num_tiles,),
            in_specs=[
                pl.BlockSpec((tn, D), lambda i: (i, 0)),      # token tile
                pl.BlockSpec((D, E_pad), lambda i: (0, 0)),   # gate weight (resident;
                                                              # constant block index ->
                                                              # fetched once)
                pl.BlockSpec((1, E_pad), lambda i: (0, 0)),   # gate bias (resident)
            ],
            out_specs=[
                pl.BlockSpec((tn, K), lambda i: (i, 0)),
                pl.BlockSpec((tn, K), lambda i: (i, 0)),
                pl.BlockSpec((None, 1, E_pad), lambda i: (i, 0, 0)),  # per-tile load
            ],
        ),
        compiler_params=pltpu.CompilerParams(
            # Independent token tiles (per-tile load partials) -> both v7x
            # TensorCores can split the grid; no-op on v5e/v6e.
            dimension_semantics=("parallel",),
            vmem_limit_bytes=vmem_limit,
        ),
    )(x_tok, w_t, b)

    # Scalar glue: reduce per-tile load partials, capacity penalty, aux loss.
    load = jnp.sum(load_part[:, 0, :E], axis=0)                  # (E,)
    capacity = capacity_factor * (N * K) / E
    capacity_penalty = jnp.sum(jax.nn.relu(load - capacity)) / E / (B * S)
    aux_loss = (alpha * capacity_penalty).astype(jnp.float32)

    idx = idx_tok.reshape(B, S, K)   # free reshapes: outputs already (N, K)
    wts = wts_tok.reshape(B, S, K)
    return idx, wts, aux_loss


def _reference(x, gate_w, gate_b, *, num_experts, top_k, capacity_factor,
               alpha, norm_topk_prob=False):
    B, S, D = x.shape
    xt = x.reshape(-1, D).astype(jnp.float32)
    logits = xt @ gate_w.T.astype(jnp.float32) + gate_b.astype(jnp.float32)
    scores = jax.nn.softmax(logits, axis=-1)
    wts, idx = lax.top_k(scores, top_k)
    if top_k > 1 and norm_topk_prob:
        wts = wts / (jnp.sum(wts, axis=-1, keepdims=True) + 1e-9)
    one_hot = jax.nn.one_hot(idx, num_experts, dtype=jnp.float32)
    load = one_hot.reshape(-1, num_experts).sum(axis=0)
    capacity = capacity_factor * (xt.shape[0] * top_k) / num_experts
    pen = jnp.sum(jax.nn.relu(load - capacity)) / num_experts / (B * S)
    return (idx.reshape(B, S, top_k), wts.reshape(B, S, top_k),
            alpha * pen, scores)


if __name__ == "__main__":
    # Test 1: shapes consistent with the module (batch=2, seq=8, d_model=32,
    # num_experts=8, top_k=2); strict comparison against the f32 reference.
    B, S, D = 2, 8, 32
    E, K = 8, 2
    capacity_factor, alpha = 1.25, 0.01

    key = jax.random.PRNGKey(0)
    kx, kw, kb = jax.random.split(key, 3)
    x = jax.random.normal(kx, (B, S, D), dtype=jnp.float32)
    bound = 1.0 / math.sqrt(D)
    gate_w = jax.random.uniform(kw, (E, D), jnp.float32, -bound, bound)
    gate_b = jax.random.uniform(kb, (E,), jnp.float32, -bound, bound)

    idx, wts, aux = moe_gate_forward(
        x, gate_w, gate_b,
        num_experts=E, top_k=K, capacity_factor=capacity_factor,
        alpha=alpha, norm_topk_prob=False)
    jax.block_until_ready((idx, wts, aux))

    ridx, rwts, raux, _ = _reference(
        x, gate_w, gate_b,
        num_experts=E, top_k=K, capacity_factor=capacity_factor,
        alpha=alpha, norm_topk_prob=False)
    assert jnp.all(idx == ridx.astype(jnp.int32)), "topk index mismatch"
    assert jnp.allclose(wts, rwts, atol=1e-5), "topk weight mismatch"
    assert jnp.allclose(aux, raux, atol=1e-6), "aux loss mismatch"

    # Test 2: uneven token count (exercises the unpadded partial final tile
    # and multi-tile load partials) with norm_topk_prob=True and a small
    # token_tile to force multiple grid steps.  Checks are robust to
    # near-tie top-k ordering differences from matmul precision.
    B2, S2 = 3, 7
    x2 = jax.random.normal(jax.random.PRNGKey(1), (B2, S2, D), jnp.float32)
    idx2, wts2, aux2 = moe_gate_forward(
        x2, gate_w, gate_b,
        num_experts=E, top_k=K, capacity_factor=capacity_factor,
        alpha=alpha, norm_topk_prob=True, token_tile=8)
    jax.block_until_ready((idx2, wts2, aux2))

    assert jnp.all((idx2 >= 0) & (idx2 < E)), "expert index out of range"
    # Aux loss must be consistent with the returned indices: validates the
    # masked per-tile load accumulation across the partial final tile.
    load2 = jax.nn.one_hot(idx2.reshape(-1), E, dtype=jnp.float32).sum(axis=0)
    cap2 = capacity_factor * (B2 * S2 * K) / E
    aux2_ref = alpha * jnp.sum(jax.nn.relu(load2 - cap2)) / E / (B2 * S2)
    assert jnp.allclose(aux2, aux2_ref, atol=1e-6), "aux/load mismatch (uneven N)"
    # Weights must equal the (normalized) reference softmax gathered at the
    # kernel's own indices.
    _, _, _, scores2 = _reference(
        x2, gate_w, gate_b, num_experts=E, top_k=K,
        capacity_factor=capacity_factor, alpha=alpha, norm_topk_prob=True)
    g = jnp.take_along_axis(scores2.reshape(B2, S2, E), idx2, axis=-1)
    g = g / (jnp.sum(g, axis=-1, keepdims=True) + 1e-9)
    assert jnp.allclose(wts2, g, atol=2e-3), "topk weight mismatch (uneven N)"

    print("KERNEL_OK")
</pallas_src>

<mosaic_0001>
module attributes {stable_mosaic.version = 11 : i64} {
  func.func @_moe_gate_kernel(%arg0: i32, %arg1: memref<16x32xf32, #tpu.memory_space<vmem>>, %arg2: memref<32x128xf32, #tpu.memory_space<vmem>>, %arg3: memref<1x128xf32, #tpu.memory_space<vmem>>, %arg4: memref<16x2xi32, #tpu.memory_space<vmem>>, %arg5: memref<16x2xf32, #tpu.memory_space<vmem>>, %arg6: memref<1x1x128xf32, #tpu.memory_space<vmem>>) attributes {dimension_semantics = [#tpu.dimension_semantics<parallel>], iteration_bounds = array<i64: 1>, scalar_prefetch = 0 : i64, scratch_operands = 0 : i64, tpu.core_type = #tpu.core_type<tc>, window_params = [{transform_indices = @transform_0, window_bounds = array<i64: 16, 32>}, {pipeline_mode = #tpu.pipeline_mode<synchronous>, transform_indices = @transform_1, window_bounds = array<i64: 32, 128>}, {pipeline_mode = #tpu.pipeline_mode<synchronous>, transform_indices = @transform_2, window_bounds = array<i64: 1, 128>}, {transform_indices = @transform_3, window_bounds = array<i64: 16, 2>}, {transform_indices = @transform_4, window_bounds = array<i64: 16, 2>}, {transform_indices = @transform_5, window_bounds = array<i64: 1, 1, 128>}]} {
    %cst = arith.constant 0.000000e+00 : f32
    %0 = vector.broadcast %cst : f32 to vector<1x128xf32>
    %c0 = arith.constant 0 : index
    %c0_0 = arith.constant 0 : index
    %1 = vector.load %arg1[%c0, %c0_0] : memref<16x32xf32, #tpu.memory_space<vmem>>, vector<16x32xf32>
    %c0_1 = arith.constant 0 : index
    %c0_2 = arith.constant 0 : index
    %2 = vector.load %arg2[%c0_1, %c0_2] : memref<32x128xf32, #tpu.memory_space<vmem>>, vector<32x128xf32>
    %cst_3 = arith.constant dense<0.000000e+00> : vector<16x128xf32>
    %3 = tpu.matmul %1, %2, %cst_3 {dimension_numbers = #tpu.dot_dimension_numbers<[1], [0], [0], [1], [0, 0, 1, 1], [], []>} : vector<16x32xf32>, vector<32x128xf32>, vector<16x128xf32> -> vector<16x128xf32>
    %c0_4 = arith.constant 0 : index
    %c0_5 = arith.constant 0 : index
    %4 = vector.load %arg3[%c0_4, %c0_5] : memref<1x128xf32, #tpu.memory_space<vmem>>, vector<1x128xf32>
    %5 = vector.broadcast %4 : vector<1x128xf32> to vector<16x128xf32>
    %6 = arith.addf %3, %5 : vector<16x128xf32>
    %cst_6 = arith.constant dense<0xFF800000> : vector<16xf32>
    %7 = vector.multi_reduction <maximumf>, %6, %cst_6 [1] : vector<16x128xf32> to vector<16xf32>
    %8 = vector.shape_cast %7 : vector<16xf32> to vector<16x1xf32>
    %9 = vector.broadcast %8 : vector<16x1xf32> to vector<16x128xf32>
    %10 = arith.subf %6, %9 : vector<16x128xf32>
    %11 = math.exp %10 : vector<16x128xf32>
    %cst_7 = arith.constant dense<0.000000e+00> : vector<16xf32>
    %12 = vector.multi_reduction <add>, %11, %cst_7 [1] : vector<16x128xf32> to vector<16xf32>
    %13 = vector.shape_cast %12 : vector<16xf32> to vector<16x1xf32>
    %14 = tpu.iota {dimensions = array<i32: 1>} : vector<16x128xi32>
    %15 = tpu.iota {dimensions = array<i32: 1>} : vector<16x2xi32>
    %cst_8 = arith.constant 0.000000e+00 : f32
    %16 = vector.broadcast %cst_8 : f32 to vector<16x2xf32>
    %c0_i32 = arith.constant 0 : i32
    %17 = vector.broadcast %c0_i32 : i32 to vector<16x2xi32>
    %cst_9 = arith.constant dense<0xFF800000> : vector<16xf32>
    %18 = vector.multi_reduction <maximumf>, %11, %cst_9 [1] : vector<16x128xf32> to vector<16xf32>
    %19 = vector.shape_cast %18 : vector<16xf32> to vector<16x1xf32>
    %20 = vector.broadcast %19 : vector<16x1xf32> to vector<16x128xf32>
    %21 = arith.cmpf oge, %11, %20 : vector<16x128xf32>
    %c128_i32 = arith.constant 128 : i32
    %22 = vector.broadcast %c128_i32 : i32 to vector<16x128xi32>
    %23 = arith.select %21, %14, %22 : vector<16x128xi1>, vector<16x128xi32>
    %cst_10 = arith.constant dense<2147483647> : vector<16xi32>
    %24 = vector.multi_reduction <minsi>, %23, %cst_10 [1] : vector<16x128xi32> to vector<16xi32>
    %25 = vector.shape_cast %24 : vector<16xi32> to vector<16x1xi32>
    %c0_i32_11 = arith.constant 0 : i32
    %26 = vector.broadcast %c0_i32_11 : i32 to vector<16x2xi32>
    %27 = arith.cmpi eq, %15, %26 : vector<16x2xi32>
    %28 = vector.shape_cast %19 : vector<16x1xf32> to vector<16x1xf32>
    %29 = vector.broadcast %28 : vector<16x1xf32> to vector<16x2xf32>
    %30 = arith.select %27, %29, %16 : vector<16x2xi1>, vector<16x2xf32>
    %c0_i32_12 = arith.constant 0 : i32
    %31 = vector.broadcast %c0_i32_12 : i32 to vector<16x2xi32>
    %32 = arith.cmpi eq, %15, %31 : vector<16x2xi32>
    %33 = vector.shape_cast %25 : vector<16x1xi32> to vector<16x1xi32>
    %34 = vector.broadcast %33 : vector<16x1xi32> to vector<16x2xi32>
    %35 = arith.select %32, %34, %17 : vector<16x2xi1>, vector<16x2xi32>
    %36 = vector.broadcast %25 : vector<16x1xi32> to vector<16x128xi32>
    %37 = arith.cmpi eq, %14, %36 : vector<16x128xi32>
    %cst_13 = arith.constant 0xFF800000 : f32
    %38 = vector.broadcast %cst_13 : f32 to vector<16x128xf32>
    %39 = arith.select %37, %38, %11 : vector<16x128xi1>, vector<16x128xf32>
    %cst_14 = arith.constant dense<0xFF800000> : vector<16xf32>
    %40 = vector.multi_reduction <maximumf>, %39, %cst_14 [1] : vector<16x128xf32> to vector<16xf32>
    %41 = vector.shape_cast %40 : vector<16xf32> to vector<16x1xf32>
    %42 = vector.broadcast %41 : vector<16x1xf32> to vector<16x128xf32>
    %43 = arith.cmpf oge, %39, %42 : vector<16x128xf32>
    %c128_i32_15 = arith.constant 128 : i32
    %44 = vector.broadcast %c128_i32_15 : i32 to vector<16x128xi32>
    %45 = arith.select %43, %14, %44 : vector<16x128xi1>, vector<16x128xi32>
    %cst_16 = arith.constant dense<2147483647> : vector<16xi32>
    %46 = vector.multi_reduction <minsi>, %45, %cst_16 [1] : vector<16x128xi32> to vector<16xi32>
    %47 = vector.shape_cast %46 : vector<16xi32> to vector<16x1xi32>
    %c1_i32 = arith.constant 1 : i32
    %48 = vector.broadcast %c1_i32 : i32 to vector<16x2xi32>
    %49 = arith.cmpi eq, %15, %48 : vector<16x2xi32>
    %50 = vector.shape_cast %41 : vector<16x1xf32> to vector<16x1xf32>
    %51 = vector.broadcast %50 : vector<16x1xf32> to vector<16x2xf32>
    %52 = arith.select %49, %51, %30 : vector<16x2xi1>, vector<16x2xf32>
    %c1_i32_17 = arith.constant 1 : i32
    %53 = vector.broadcast %c1_i32_17 : i32 to vector<16x2xi32>
    %54 = arith.cmpi eq, %15, %53 : vector<16x2xi32>
    %55 = vector.shape_cast %47 : vector<16x1xi32> to vector<16x1xi32>
    %56 = vector.broadcast %55 : vector<16x1xi32> to vector<16x2xi32>
    %57 = arith.select %54, %56, %35 : vector<16x2xi1>, vector<16x2xi32>
    %58 = vector.broadcast %47 : vector<16x1xi32> to vector<16x128xi32>
    %59 = arith.cmpi eq, %14, %58 : vector<16x128xi32>
    %cst_18 = arith.constant 0xFF800000 : f32
    %60 = vector.broadcast %cst_18 : f32 to vector<16x128xf32>
    %61 = arith.select %59, %60, %39 : vector<16x128xi1>, vector<16x128xf32>
    %cst_19 = arith.constant 0xFF800000 : f32
    %62 = vector.broadcast %cst_19 : f32 to vector<16x128xf32>
    %63 = arith.cmpf oeq, %61, %62 : vector<16x128xf32>
    %64 = arith.extui %63 : vector<16x128xi1> to vector<16x128xi32>
    %65 = arith.sitofp %64 : vector<16x128xi32> to vector<16x128xf32>
    %66 = tpu.iota {dimensions = array<i32: 0>} : vector<16x1xi32>
    %c16_i32 = arith.constant 16 : i32
    %67 = arith.muli %arg0, %c16_i32 : i32
    %c0_i32_20 = arith.constant 0 : i32
    %68 = arith.addi %67, %c0_i32_20 : i32
    %69 = vector.broadcast %68 : i32 to vector<16x1xi32>
    %70 = arith.addi %66, %69 : vector<16x1xi32>
    %c16_i32_21 = arith.constant 16 : i32
    %71 = vector.broadcast %c16_i32_21 : i32 to vector<16x1xi32>
    %72 = arith.cmpi slt, %70, %71 : vector<16x1xi32>
    %cst_22 = arith.constant 0.000000e+00 : f32
    %73 = vector.shape_cast %72 : vector<16x1xi1> to vector<16x1xi1>
    %74 = vector.broadcast %73 : vector<16x1xi1> to vector<16x128xi1>
    %75 = vector.broadcast %cst_22 : f32 to vector<16x128xf32>
    %76 = arith.select %74, %65, %75 : vector<16x128xi1>, vector<16x128xf32>
    %cst_23 = arith.constant dense<0.000000e+00> : vector<128xf32>
    %77 = vector.multi_reduction <add>, %76, %cst_23 [0] : vector<16x128xf32> to vector<128xf32>
    %78 = vector.shape_cast %77 : vector<128xf32> to vector<1x128xf32>
    %79 = arith.addf %0, %78 : vector<1x128xf32>
    %80 = tpu.reciprocal %13 : vector<16x1xf32> -> vector<16x1xf32>
    %81 = vector.broadcast %80 : vector<16x1xf32> to vector<16x2xf32>
    %82 = arith.mulf %52, %81 : vector<16x2xf32>
    %c0_24 = arith.constant 0 : index
    %c0_25 = arith.constant 0 : index
    %83 = vector.load %arg4[%c0_24, %c0_25] : memref<16x2xi32, #tpu.memory_space<vmem>>, vector<16x2xi32>
    tpu.vector_store %arg4[%c0_24, %c0_25], %57 {strides = array<i32>} : memref<16x2xi32, #tpu.memory_space<vmem>>, vector<16x2xi32>,
    %c0_26 = arith.constant 0 : index
    %c0_27 = arith.constant 0 : index
    %84 = vector.load %arg5[%c0_26, %c0_27] : memref<16x2xf32, #tpu.memory_space<vmem>>, vector<16x2xf32>
    tpu.vector_store %arg5[%c0_26, %c0_27], %82 {strides = array<i32>} : memref<16x2xf32, #tpu.memory_space<vmem>>, vector<16x2xf32>,
    %c0_28 = arith.constant 0 : index
    %c0_29 = arith.constant 0 : index
    %c0_30 = arith.constant 0 : index
    %85 = vector.load %arg6[%c0_28, %c0_29, %c0_30] : memref<1x1x128xf32, #tpu.memory_space<vmem>>, vector<1x1x128xf32>
    %86 = vector.shape_cast %85 : vector<1x1x128xf32> to vector<1x128xf32>
    %87 = vector.shape_cast %79 : vector<1x128xf32> to vector<1x1x128xf32>
    tpu.vector_store %arg6[%c0_28, %c0_29, %c0_30], %87 {strides = array<i32>} : memref<1x1x128xf32, #tpu.memory_space<vmem>>, vector<1x1x128xf32>,
    return
  }
  func.func @transform_0(%arg0: i32) -> (i32, i32) {
    %c0_i32 = arith.constant 0 : i32
    %c0_i32_0 = arith.constant 0 : i32
    return %arg0, %c0_i32 : i32, i32
  }
  func.func @transform_1(%arg0: i32) -> (i32, i32) {
    %c0_i32 = arith.constant 0 : i32
    %c0_i32_0 = arith.constant 0 : i32
    %c0_i32_1 = arith.constant 0 : i32
    return %c0_i32, %c0_i32_0 : i32, i32
  }
  func.func @transform_2(%arg0: i32) -> (i32, i32) {
    %c0_i32 = arith.constant 0 : i32
    %c0_i32_0 = arith.constant 0 : i32
    %c0_i32_1 = arith.constant 0 : i32
    return %c0_i32, %c0_i32_0 : i32, i32
  }
  func.func @transform_3(%arg0: i32) -> (i32, i32) {
    %c0_i32 = arith.constant 0 : i32
    %c0_i32_0 = arith.constant 0 : i32
    return %arg0, %c0_i32 : i32, i32
  }
  func.func @transform_4(%arg0: i32) -> (i32, i32) {
    %c0_i32 = arith.constant 0 : i32
    %c0_i32_0 = arith.constant 0 : i32
    return %arg0, %c0_i32 : i32, i32
  }
  func.func @transform_5(%arg0: i32) -> (i32, i32, i32) {
    %c0_i32 = arith.constant 0 : i32
    %c0_i32_0 = arith.constant 0 : i32
    %c0_i32_1 = arith.constant 0 : i32
    return %arg0, %c0_i32, %c0_i32_0 : i32, i32, i32
  }
}

</mosaic_0001>

<llo_original>
// kernel: tpu_custom_call.1
$region0: #{tpu_custom_call.1}
  #allocation0 [shape = 'u32[]', space=smem, size = 0x4, offset = 0x4, fixed_abs, tag = 'smem constant byte address 0x4 - core index']
  #allocation1 [shape = 'u32[144,128]{1,0:T(1,128)}', space=vmem, size = 0x12000, scoped, tag = 'internal scratch']
  %s0 = inlined_call_operand.hbm [shape: f32[16,32], index: 0, kind: input, shape index: {}]
  %s1 = inlined_call_operand.hbm [shape: f32[32,128], index: 1, kind: input, shape index: {}]
  %s2 = inlined_call_operand.vmem [shape: f32[1,128], index: 2, kind: input, shape index: {}]
  %s3 = inlined_call_operand.vmem [shape: s32[16,2], index: 3, kind: output, shape index: {0}]
  %s4 = inlined_call_operand.vmem [shape: f32[16,2], index: 4, kind: output, shape index: {1}]
  %s5 = inlined_call_operand.hbm [shape: f32[1,1,128], index: 5, kind: output, shape index: {2}]
  %6 = xla_tuple %s3, %s4, %s5
  %s7 = sld [smem:[#allocation0]]
  $region46: #{tpu_custom_call.1} parent=0
    _
  %s9 = ssub.s32 1, %s7
  %s10 = scalar_select 0, %s9, %s7
  $region1: #{tpu_custom_call.1} parent=0
    #allocation2 [shape = 'u8[8192]{0}', space=vmem, size = 0x2000, scoped, tag = 'input window, operand 0, single buffered']
    #allocation3 [shape = 's32[1]{0}', space=sflag, size = 0x4, scoped, tag = 'scoped memory for tpu_custom_call.1']
    #allocation4 [shape = 's32[1]{0}', space=sflag, size = 0x4, scoped, tag = 'scoped memory for tpu_custom_call.1']
    #allocation5 [shape = 'u8[16384]{0}', space=vmem, size = 0x4000, scoped, tag = 'input window, operand 1, single buffered']
    #allocation6 [shape = 's32[1]{0}', space=sflag, size = 0x4, scoped, tag = 'scoped memory for tpu_custom_call.1']
    #allocation7 [shape = 'u8[512]{0}', space=vmem, size = 0x400, scoped, tag = 'output window, operand 2, single buffered']
    %11 = vsyncpa [#allocation3], 0
    %12 = vsyncpa [#allocation6], 0
    %13 = vsyncpa [#allocation4], 0
    // Predicated region
    $region2: #{tpu_custom_call.1} parent=1 // pred_check
      _
    $region3: #{tpu_custom_call.1} parent=1 // pred_check_branch
      %15 = sbr.rel (0) target = $region5
    $region4: #{tpu_custom_call.1} parent=1 // pred_region
      %s17 = ssub.s32 256, 256
      %18 = vsyncadd [#allocation3], %s17
      %s19 = sshll.u32 [#allocation2], 4
      %s20 = int_to_ptr.vmem [resolvable:$true] %s19
      %25 = dma.hbm_to_vmem [thread:$0]  %s0, 256, %s20, [#allocation3], 128, 128, 8
    $region5: #{tpu_custom_call.1} parent=1 // pred_fallthru
      _
    // Predicated region
    $region6: #{tpu_custom_call.1} parent=1 // pred_check
      _
    $region7: #{tpu_custom_call.1} parent=1 // pred_check_branch
      %27 = sbr.rel (0) target = $region9
    $region8: #{tpu_custom_call.1} parent=1 // pred_region
      %s29 = ssub.s32 512, 512
      %30 = vsyncadd [#allocation6], %s29
      %s31 = sshll.u32 [#allocation5], 4
      %s32 = int_to_ptr.vmem [resolvable:$true] %s31
      %37 = dma.hbm_to_vmem [thread:$0]  %s1, 512, %s32, [#allocation6], 128, 128, 8
    $region9: #{tpu_custom_call.1} parent=1 // pred_fallthru
      _
    // Predicated region
    $region10: #{tpu_custom_call.1} parent=1 // pred_check
      _
    $region11: #{tpu_custom_call.1} parent=1 // pred_check_branch
      %39 = sbr.rel (0) target = $region13
    $region12: #{tpu_custom_call.1} parent=1 // pred_region
      _
    $region13: #{tpu_custom_call.1} parent=1 // pred_fallthru
      _
    // Predicated region
    $region14: #{tpu_custom_call.1} parent=1 // pred_check
      _
    $region15: #{tpu_custom_call.1} parent=1 // pred_check_branch
      %41 = sbr.rel (0) target = $region17
    $region16: #{tpu_custom_call.1} parent=1 // pred_region
      %42 = dma.done [#allocation3], 256
    $region17: #{tpu_custom_call.1} parent=1 // pred_fallthru
      _
    // Predicated region
    $region18: #{tpu_custom_call.1} parent=1 // pred_check
      _
    $region19: #{tpu_custom_call.1} parent=1 // pred_check_branch
      %44 = sbr.rel (0) target = $region21
    $region20: #{tpu_custom_call.1} parent=1 // pred_region
      %45 = dma.done [#allocation6], 512
    $region21: #{tpu_custom_call.1} parent=1 // pred_fallthru
      _
    %v46 = vld [vmem:[#allocation2] sm:$0xff]
    %v47 = vld [vmem:[#allocation2 + $0x8] sm:$0xff]
    %v48 = vld [vmem:[#allocation5] sm:$0xff]
    %v49 = vld [vmem:[#allocation5 + $0x8] sm:$0xff]
    %v50 = vld [vmem:[#allocation5 + $0x10] sm:$0xff]
    %v51 = vld [vmem:[#allocation5 + $0x18] sm:$0xff]
    %v52 = vld [vmem:[%s2] sm:$0x1]
    %v54 = vlaneseq
    %v55 = vshrl.u32 %v54, 7
    %v56 = vsub.s32 0, %v55
    %v57 = vrot.slane %v52, %v56
    %vm59 = vcmask 261120
    %v61 = vsel %vm59, %v46, 0
    %v64 = vsel %vm59, %v47, 0
    %66 = vmatprep.subr.mxu0 0.0
    %67 = vmatpush1.msra.mxu0 %v48
    %68 = vmatprep.subr.mxu0 0.0
    %69 = vmatpush1.msra.mxu0 %v49
    %70 = vmatprep.subr.mxu0 0.0
    %71 = vmatpush1.msra.mxu0 %v50
    %72 = vmatprep.subr.mxu0 0.0
    %73 = vmatpush1.msra.mxu0 %v51
    %74 = vmatprep.subr.mxu0 0.0
    %75 = vmatpush1.msra.mxu0 0.0
    %76 = vmatprep.subr.mxu0 0.0
    %77 = vmatpush1.msra.mxu0 0.0
    %78 = vmatprep.subr.mxu0 0.0
    %79 = vmatpush1.msra.mxu0 0.0
    %80 = vmatprep.subr.mxu0 0.0
    %81 = vmatpush1.msra.mxu0 0.0
    %82 = vmatprep.subr.mxu0 0.0
    %83 = vmatpush1.msra.mxu0 0.0
    %84 = vmatprep.subr.mxu0 0.0
    %85 = vmatpush1.msra.mxu0 0.0
    %86 = vmatprep.subr.mxu0 0.0
    %87 = vmatpush1.msra.mxu0 0.0
    %88 = vmatprep.subr.mxu0 0.0
    %89 = vmatpush1.msra.mxu0 0.0
    %90 = vmatprep.subr.mxu0 0.0
    %91 = vmatpush1.msra.mxu0 0.0
    %92 = vmatprep.subr.mxu0 0.0
    %93 = vmatpush1.msra.mxu0 0.0
    %94 = vmatprep.subr.mxu0 0.0
    %95 = vmatpush1.msra.mxu0 0.0
    %96 = vmatprep.subr.mxu0 0.0
    %97 = vmatpush1.msra.mxu0 0.0
    %98 = vmatprep.subr.mxu0 0.0
    %99 = vmatpush1.msra.mxu0 0.0
    %100 = vmatprep.subr.mxu0 0.0
    %101 = vmatpush1.msra.mxu0 0.0
    %102 = vmatprep.subr.mxu0 0.0
    %103 = vmatpush1.msra.mxu0 0.0
    %104 = vmatprep.subr.mxu0 0.0
    %105 = vmatpush1.msra.mxu0 0.0
    %106 = vmatprep.subr.mxu0 0.0
    %107 = vmatpush1.msra.mxu0 0.0
    %108 = vmatprep.subr.mxu0 0.0
    %109 = vmatpush1.msra.mxu0 0.0
    %110 = vmatprep.subr.mxu0 0.0
    %111 = vmatpush1.msra.mxu0 0.0
    %112 = vmatprep.subr.mxu0 0.0
    %113 = vmatpush1.msra.mxu0 0.0
    %114 = vmatprep.subr.mxu0 0.0
    %115 = vmatpush1.msra.mxu0 0.0
    %116 = vmatprep.subr.mxu0 0.0
    %117 = vmatpush1.msra.mxu0 0.0
    %118 = vmatprep.subr.mxu0 0.0
    %119 = vmatpush1.msra.mxu0 0.0
    %120 = vmatprep.subr.mxu0 0.0
    %121 = vmatpush1.msra.mxu0 0.0
    %122 = vmatprep.subr.mxu0 0.0
    %123 = vmatpush1.msra.mxu0 0.0
    %124 = vmatprep.subr.mxu0 0.0
    %125 = vmatpush1.msra.mxu0 0.0
    %126 = vmatprep.subr.mxu0 0.0
    %127 = vmatpush1.msra.mxu0 0.0
    %128 = vmatprep.subr.mxu0 0.0
    %129 = vmatpush1.msra.mxu0 0.0
    %130 = vmatprep.mubr.f32.mxu0 0.0
    %131 = vmatmul.mubr.f32.gmra.mrb[0].mxu0 %v61
    %v132 = vpop.f32.mrb[0].mxu0
    %v133 = vadd.f32 %v57, %v132
    %v134 = vpop.f32.mrb[0].mxu0
    %135 = vmatprep.mubr.f32.mxu0 0.0
    %136 = vmatmul.mubr.f32.gmra.mrb[0].mxu0 %v64
    %v137 = vpop.f32.mrb[0].mxu0
    %v138 = vadd.f32 %v57, %v137
    %v139 = vpop.f32.mrb[0].mxu0
    %140 = vdwg.mxu0
    %141 = vmax.xlane.f32.xlu0 %v133
    %v142 = vpop.xlane.xlu0 %141
    %143 = vmax.xlane.f32.xlu0 %v138
    %v144 = vpop.xlane.xlu0 %143
    %v145 = vsub.f32 %v133, %v142
    %v146 = vsub.f32 %v138, %v144
    %v147 = vmul.f32 %v145, 1.442695
    %v148 = vpow.pop %v147
    %v149 = vmul.f32 %v146, 1.442695
    %v150 = vpow.pop %v149
    %151 = vadd.xlane.f32.xlu0 %v148
    %v152 = vpop.xlane.xlu0 %151
    %153 = vadd.xlane.f32.xlu0 %v150
    %v154 = vpop.xlane.xlu0 %153
    %v155 = vlaneseq
    %v156 = vand.u32 %v155, 127
    %157 = vmax.xlane.f32.xlu0 %v148
    %v158 = vpop.xlane.xlu0 %157
    %159 = vmax.xlane.f32.xlu0 %v150
    %v160 = vpop.xlane.xlu0 %159
    %vm161 = vcmp.ge.f32.partialorder %v148, %v158
    %vm162 = vcmp.ge.f32.partialorder %v150, %v160
    %v163 = vsel %vm161, %v156, 128
    %v164 = vsel %vm162, %v156, 128
    %v165 = vand.u32 %v163, 65535
    %v166 = vshra.s32 %v163, 16
    %v167 = vcvt.s32.f32 %v165
    %v168 = vcvt.s32.f32 %v166
    %169 = vmin.xlane.f32.xlu0 %v168
    %v170 = vpop.xlane.xlu0 %169
    %vm171 = vcmp.eq.f32.partialorder %v168, %v170
    %v172 = vsel %vm171, %v167, inf
    %173 = vmin.xlane.f32.xlu0 %v172
    %v174 = vpop.xlane.xlu0 %173
    %v175 = vcvt.f32.s32 %v174
    %v176 = vcvt.f32.s32 %v170
    %v177 = vshll.u32 %v176, 16
    %v178 = vadd.s32 %v177, %v175
    %v179 = vand.u32 %v164, 65535
    %v180 = vshra.s32 %v164, 16
    %v181 = vcvt.s32.f32 %v179
    %v182 = vcvt.s32.f32 %v180
    %183 = vmin.xlane.f32.xlu0 %v182
    %v184 = vpop.xlane.xlu0 %183
    %vm185 = vcmp.eq.f32.partialorder %v182, %v184
    %v186 = vsel %vm185, %v181, inf
    %187 = vmin.xlane.f32.xlu0 %v186
    %v188 = vpop.xlane.xlu0 %187
    %v189 = vcvt.f32.s32 %v188
    %v190 = vcvt.f32.s32 %v184
    %v191 = vshll.u32 %v190, 16
    %v192 = vadd.s32 %v191, %v189
    %vm193 = vcmp.eq.s32.totalorder %v156, 0
    %v194 = vsel %vm193, %v158, 0.0
    %v195 = vsel %vm193, %v160, 0.0
    %v196 = vsel %vm193, %v178, 0
    %v197 = vsel %vm193, %v192, 0
    %vm198 = vcmp.eq.s32.totalorder %v156, %v178
    %vm199 = vcmp.eq.s32.totalorder %v156, %v192
    %v200 = vsel %vm198, -inf, %v148
    %v201 = vsel %vm199, -inf, %v150
    %202 = vmax.xlane.f32.xlu0 %v200
    %v203 = vpop.xlane.xlu0 %202
    %204 = vmax.xlane.f32.xlu0 %v201
    %v205 = vpop.xlane.xlu0 %204
    %vm206 = vcmp.ge.f32.partialorder %v200, %v203
    %vm207 = vcmp.ge.f32.partialorder %v201, %v205
    %v208 = vsel %vm206, %v156, 128
    %v209 = vsel %vm207, %v156, 128
    %v210 = vand.u32 %v208, 65535
    %v211 = vshra.s32 %v208, 16
    %v212 = vcvt.s32.f32 %v210
    %v213 = vcvt.s32.f32 %v211
    %214 = vmin.xlane.f32.xlu0 %v213
    %v215 = vpop.xlane.xlu0 %214
    %vm216 = vcmp.eq.f32.partialorder %v213, %v215
    %v217 = vsel %vm216, %v212, inf
    %218 = vmin.xlane.f32.xlu0 %v217
    %v219 = vpop.xlane.xlu0 %218
    %v220 = vcvt.f32.s32 %v219
    %v221 = vcvt.f32.s32 %v215
    %v222 = vshll.u32 %v221, 16
    %v223 = vadd.s32 %v222, %v220
    %v224 = vand.u32 %v209, 65535
    %v225 = vshra.s32 %v209, 16
    %v226 = vcvt.s32.f32 %v224
    %v227 = vcvt.s32.f32 %v225
    %228 = vmin.xlane.f32.xlu0 %v227
    %v229 = vpop.xlane.xlu0 %228
    %vm230 = vcmp.eq.f32.partialorder %v227, %v229
    %v231 = vsel %vm230, %v226, inf
    %232 = vmin.xlane.f32.xlu0 %v231
    %v233 = vpop.xlane.xlu0 %232
    %v234 = vcvt.f32.s32 %v233
    %v235 = vcvt.f32.s32 %v229
    %v236 = vshll.u32 %v235, 16
    %v237 = vadd.s32 %v236, %v234
    %vm238 = vcmp.eq.s32.totalorder %v156, 1
    %v239 = vsel %vm238, %v203, %v194
    %v240 = vsel %vm238, %v205, %v195
    %v241 = vsel %vm238, %v223, %v196
    %v242 = vsel %vm238, %v237, %v197
    %vm243 = vcmp.eq.s32.totalorder %v156, %v223
    %vm244 = vcmp.eq.s32.totalorder %v156, %v237
    %v245 = vsel %vm243, -inf, %v200
    %v246 = vsel %vm244, -inf, %v201
    %vm247 = vcmp.eq.f32.partialorder %v245, -inf
    %vm248 = vcmp.eq.f32.partialorder %v246, -inf
    %v249 = vsel %vm247, 1, 0
    %v250 = vsel %vm248, 1, 0
    %v251 = vcvt.s32.f32 %v249
    %v252 = vcvt.s32.f32 %v250
    %v253 = vlaneseq
    %v254 = vshrl.u32 %v253, 7
    %v255 = vadd.s32 %v254, 8
    %s256 = smul.u32 0, 16
    %v257 = vstv %s256
    %v258 = vadd.s32 %v254, %v257
    %v259 = vadd.s32 %v255, %v257
    %vm260 = vcmp.lt.s32.totalorder %v258, 16
    %vm261 = vcmp.lt.s32.totalorder %v259, 16
    %v262 = vsel %vm260, 1, 0
    %v263 = vsel %vm261, 1, 0
    %vm264 = vcmp.eq.s32.totalorder %v262, 1
    %vm265 = vcmp.eq.s32.totalorder %v263, 1
    %v266 = vsel %vm264, %v251, 0.0
    %v267 = vsel %vm265, %v252, 0.0
    %v268 = vadd.f32 %v266, %v267
    %v269 = vrot.slane %v268, 4
    %v270 = vadd.f32 %v268, %v269
    %v271 = vrot.slane %v270, 2
    %v272 = vadd.f32 %v270, %v271
    %v273 = vrot.slane %v272, 1
    %v274 = vadd.f32 %v272, %v273
    %v275 = vadd.f32 %v274, 0.0
    %v276 = vrcp.pop %v152
    %v277 = vrcp.pop %v154
    %v278 = vmul.f32 %v239, %v276
    %v279 = vmul.f32 %v240, %v277
    %vm280 = vcmask 15360
    %281 = vst.msk [vmem:[%s3] sm:$0xff] %vm280, %v241
    %282 = vst.msk [vmem:[%s3 + $0x8] sm:$0xff] %vm280, %v242
    %283 = vst.msk [vmem:[%s4] sm:$0xff] %vm280, %v278
    %284 = vst.msk [vmem:[%s4 + $0x8] sm:$0xff] %vm280, %v279
    %285 = vst [vmem:[#allocation7] sm:$0x1] %v275
    // Predicated region
    $region22: #{tpu_custom_call.1} parent=1 // pred_check
      _
    $region23: #{tpu_custom_call.1} parent=1 // pred_check_branch
      %287 = sbr.rel (0) target = $region25
    $region24: #{tpu_custom_call.1} parent=1 // pred_region
      _
    $region25: #{tpu_custom_call.1} parent=1 // pred_fallthru
      _
    // Predicated region
    $region26: #{tpu_custom_call.1} parent=1 // pred_check
      _
    $region27: #{tpu_custom_call.1} parent=1 // pred_check_branch
      %289 = sbr.rel (0) target = $region29
    $region28: #{tpu_custom_call.1} parent=1 // pred_region
      _
    $region29: #{tpu_custom_call.1} parent=1 // pred_fallthru
      _
    // Predicated region
    $region30: #{tpu_custom_call.1} parent=1 // pred_check
      _
    $region31: #{tpu_custom_call.1} parent=1 // pred_check_branch
      %291 = sbr.rel (0) target = $region33
    $region32: #{tpu_custom_call.1} parent=1 // pred_region
      %s293 = ssub.s32 16, 16
      %294 = vsyncadd [#allocation4], %s293
      %s296 = sshll.u32 [#allocation7], 4
      %s297 = int_to_ptr.vmem [resolvable:$true] %s296
      %299 = dma.vmem_to_hbm [thread:$0]  %s297, 16, %s5, [#allocation4]
    $region33: #{tpu_custom_call.1} parent=1 // pred_fallthru
      _
    // Predicated region
    $region34: #{tpu_custom_call.1} parent=1 // pred_check
      _
    $region35: #{tpu_custom_call.1} parent=1 // pred_check_branch
      %301 = sbr.rel (0) target = $region37
    $region36: #{tpu_custom_call.1} parent=1 // pred_region
      _
    $region37: #{tpu_custom_call.1} parent=1 // pred_fallthru
      _
    // Predicated region
    $region38: #{tpu_custom_call.1} parent=1 // pred_check
      _
    $region39: #{tpu_custom_call.1} parent=1 // pred_check_branch
      %303 = sbr.rel (0) target = $region41
    $region40: #{tpu_custom_call.1} parent=1 // pred_region
      _
    $region41: #{tpu_custom_call.1} parent=1 // pred_fallthru
      _
    // Predicated region
    $region42: #{tpu_custom_call.1} parent=1 // pred_check
      _
    $region43: #{tpu_custom_call.1} parent=1 // pred_check_branch
      %305 = sbr.rel (0) target = $region45
    $region44: #{tpu_custom_call.1} parent=1 // pred_region
      %306 = dma.done [#allocation4], 16
    $region45: #{tpu_custom_call.1} parent=1 // pred_fallthru
      _
    %307 = vsyncpa [#allocation3], 1
    %308 = vsyncpa [#allocation6], 1
    %309 = vsyncpa [#allocation4], 1

</llo_original>
